<compile_context>
chip_gen: v7x
topology: tpu7x:2x2x1
jax: 0.10.0
libtpu: 0.0.40
codegen_flags: <defaults>
</compile_context>

<pallas_src>
import math

import jax
import jax.numpy as jnp
from jax import lax
from jax.experimental import pallas as pl
from jax.experimental.pallas import tpu as pltpu

TAU = 0.1


def _cdiv(a, b):
    return -(-a // b)


# ---------------------------------------------------------------------------
# Sinkhorn + weight fold: tiny [K1, K0] / [K, dim] work, done once in JAX.
# ---------------------------------------------------------------------------
def _sinkhorn(coupling, n_iter=20):
    log_alpha = -coupling / TAU

    def body(_, la):
        la = la - jax.scipy.special.logsumexp(la, axis=-1, keepdims=True)
        la = la - jax.scipy.special.logsumexp(la, axis=-2, keepdims=True)
        return la

    return jnp.exp(lax.fori_loop(0, n_iter, body, log_alpha))


# ---------------------------------------------------------------------------
# Embedding kernel.
#   tgt_ref : [TM, G+1]      f32: local ids (or -1) for G packed slots + a 1.
#   aff_ref : [G+1, G*K]     f32: affine map; row g replicates slot g across
#                            its K-wide block, last row is -(column % K).
#   w_ref   : [G*K, G*dim]   f32: kron(I_G, W_eff)  (W_eff if G == 1).
#   out_ref : [TM, G*dim]    out_dtype.
# One tiny MXU dot -> one VPU compare -> one MXU dot.  O(G*K) per row.
# ---------------------------------------------------------------------------
def _embed_kernel(tgt_ref, aff_ref, w_ref, out_ref):
    diff = jnp.dot(tgt_ref[...], aff_ref[...],
                   preferred_element_type=jnp.float32)       # [TM, G*K]
    onehot = (diff == 0.0).astype(jnp.float32)               # packed one-hot
    out_ref[...] = jnp.dot(onehot, w_ref[...],
                           preferred_element_type=jnp.float32
                           ).astype(out_ref.dtype)


# ---------------------------------------------------------------------------
# Wrapper mirroring CoupledEmbedding.forward(process_idx, event_types).
# (process_idx must be a static Python int.)
# ---------------------------------------------------------------------------
def coupled_embedding_forward(process_idx, event_types, src_emb_w, coupling,
                              n_iter=20, out_dtype=jnp.float32):
    if process_idx not in (0, 1):
        raise ValueError("process_idx must be 0 or 1")

    B, S = event_types.shape
    dim, k0p1 = src_emb_w.shape
    K1, K0 = coupling.shape
    assert k0p1 == K0 + 1
    M = B * S

    wT = src_emb_w.T.astype(jnp.float32)                     # [K0+1, dim]
    if process_idx == 0:
        w_eff = wT                                           # [K0+1, dim]
        K = K0 + 1
    else:
        trans = _sinkhorn(coupling.astype(jnp.float32), n_iter)   # [K1, K0]
        # Fold the coupling transport into the weight once (tiny matmul).
        w_eff = jnp.concatenate([wT[:1, :], trans @ wT[1:, :]], axis=0)
        K = K1 + 1                                           # [K1+1, dim]

    # --- token packing factor: G*dim is a multiple of 128 (lane-dense stores)
    if dim % 128 == 0:
        G = 1
    else:
        G = 128 // math.gcd(dim, 128)
        # Guard: block-diagonal weight must stay small (VMEM / HBM read).
        if G * K * G * dim * 4 > (8 << 20):
            G = 1                                            # masked-store fallback
    gk = G * K
    gd = G * dim
    rows = _cdiv(M, G)

    # --- row tile from an explicit VMEM budget (fits v7x 64 MiB w/ headroom)
    out_itemsize = jnp.dtype(out_dtype).itemsize
    gk_pad = _cdiv(gk, 128) * 128                 # lane-padded one-hot width
    tg_pad = _cdiv(G + 1, 128) * 128              # lane-padded target width
    per_row = (2 * gd * out_itemsize              # output double-buffer
               + 2 * tg_pad * 4                   # target double-buffer
               + 3 * gk_pad * 4)                  # one-hot / diff temporaries
    const_bytes = 2 * (gk * gd * 4 + (G + 1) * gk_pad * 4)   # weights (2x, safe)
    budget = (20 << 20) - const_bytes
    cap_rows = max(8, (budget // per_row) // 8 * 8)
    tm = min(4096, cap_rows, _cdiv(rows, 8) * 8)
    # v7x has 2 TensorCores: prefer >= 2 grid steps when there is enough work.
    if rows >= 256 and _cdiv(rows, tm) == 1:
        tm = max(8, _cdiv(_cdiv(rows, 2), 8) * 8)
    rows_pad = _cdiv(rows, tm) * tm

    # --- flatten + pad events; keep LOCAL ids (0..K-1); -1 => zero embedding
    et = event_types.reshape(-1).astype(jnp.int32)
    et = jnp.pad(et, (0, rows_pad * G - M), constant_values=-1)
    et = et.reshape(rows_pad, G)
    valid = (et >= 0) & (et < K)
    tgt_local = jnp.where(valid, et, -1).astype(jnp.float32)          # [rows_pad, G]
    tgt_aug = jnp.concatenate(
        [tgt_local, jnp.ones((rows_pad, 1), jnp.float32)], axis=1)    # [rows_pad, G+1]

    # --- affine map: row g replicates slot g over its block; last row -(c%K)
    col = jnp.arange(gk, dtype=jnp.int32)
    rep = (col[None, :] // K == jnp.arange(G, dtype=jnp.int32)[:, None]
           ).astype(jnp.float32)                                      # [G, G*K]
    aff = jnp.concatenate(
        [rep, -(col % K).astype(jnp.float32)[None, :]], axis=0)       # [G+1, G*K]

    # --- block-diagonal effective weight
    w_big = (jnp.kron(jnp.eye(G, dtype=jnp.float32), w_eff)
             if G > 1 else w_eff)                                     # [G*K, G*dim]

    grid = (rows_pad // tm,)
    out = pl.pallas_call(
        _embed_kernel,
        out_shape=jax.ShapeDtypeStruct((rows_pad, gd), out_dtype),
        grid=grid,
        in_specs=[
            pl.BlockSpec((tm, G + 1), lambda i: (i, 0)),
            pl.BlockSpec((G + 1, gk), lambda i: (0, 0)),   # constant: fetched once
            pl.BlockSpec((gk, gd), lambda i: (0, 0)),      # constant: fetched once
        ],
        out_specs=pl.BlockSpec((tm, gd), lambda i: (i, 0)),
        compiler_params=pltpu.CompilerParams(
            dimension_semantics=("parallel",),
            vmem_limit_bytes=48 * 1024 * 1024,
        ),
    )(tgt_aug, aff, w_big)

    # Contiguous (free) reshape back to per-token rows; slice only if padded.
    flat = out.reshape(rows_pad * G, dim)
    if rows_pad * G != M:
        flat = flat[:M]          # fuses with the consumer under jit
    return flat.reshape(B, S, dim)


# ---------------------------------------------------------------------------
# Pure-JAX reference (mirrors the PyTorch code) for a sanity check.
# ---------------------------------------------------------------------------
def _reference_forward(process_idx, event_types, src_emb_w, coupling,
                       n_iter=20):
    K1, K0 = coupling.shape
    num_types = [K0, K1]
    la = -coupling / TAU
    for _ in range(n_iter):
        la = la - jax.scipy.special.logsumexp(la, axis=-1, keepdims=True)
        la = la - jax.scipy.special.logsumexp(la, axis=-2, keepdims=True)
    trans = jnp.exp(la)
    onehot = jax.nn.one_hot(event_types, num_types[process_idx] + 1,
                            dtype=jnp.float32)
    if process_idx == 0:
        aligned = onehot
    else:
        aligned = jnp.concatenate(
            [onehot[:, :, :1], jnp.matmul(onehot[:, :, 1:], trans)], axis=-1)
    return jnp.matmul(aligned, src_emb_w.T)


if __name__ == "__main__":
    # Small deterministic setup: num_types = [K0=4, K1=6], dim=32, B=2, S=8.
    key = jax.random.PRNGKey(0)
    k_w, k_c, k_e0, k_e1, k_e2 = jax.random.split(key, 5)

    K0, K1, DIM, B, S = 4, 6, 32, 2, 8

    src_emb_w = jax.random.normal(k_w, (DIM, K0 + 1), dtype=jnp.float32) * 0.1
    coupling = jax.random.normal(k_c, (K1, K0), dtype=jnp.float32)

    events_p0 = jax.random.randint(k_e0, (B, S), 0, K0 + 1, dtype=jnp.int32)
    events_p1 = jax.random.randint(k_e1, (B, S), 0, K1 + 1, dtype=jnp.int32)

    out0 = coupled_embedding_forward(0, events_p0, src_emb_w, coupling)
    out1 = coupled_embedding_forward(1, events_p1, src_emb_w, coupling)

    # Ragged shape: exercises row padding + packing tail handling.
    B2, S2 = 3, 7
    events_p1b = jax.random.randint(k_e2, (B2, S2), 0, K1 + 1, dtype=jnp.int32)
    out1b = coupled_embedding_forward(1, events_p1b, src_emb_w, coupling)

    # bf16 output path (halves store bytes for this HBM-store-bound kernel).
    out1_bf16 = coupled_embedding_forward(1, events_p1, src_emb_w, coupling,
                                          out_dtype=jnp.bfloat16)

    jax.block_until_ready((out0, out1, out1b, out1_bf16))

    ref0 = _reference_forward(0, events_p0, src_emb_w, coupling)
    ref1 = _reference_forward(1, events_p1, src_emb_w, coupling)
    ref1b = _reference_forward(1, events_p1b, src_emb_w, coupling)

    assert out0.shape == (B, S, DIM) and out1.shape == (B, S, DIM)
    assert out1b.shape == (B2, S2, DIM)
    assert out1_bf16.shape == (B, S, DIM) and out1_bf16.dtype == jnp.bfloat16
    assert jnp.allclose(out0, ref0, atol=1e-4, rtol=1e-4)
    assert jnp.allclose(out1, ref1, atol=1e-4, rtol=1e-4)
    assert jnp.allclose(out1b, ref1b, atol=1e-4, rtol=1e-4)
    assert jnp.allclose(out1_bf16.astype(jnp.float32), ref1,
                        atol=1e-2, rtol=2e-2)

    print("KERNEL_OK")
</pallas_src>

<mosaic_0001>
module attributes {stable_mosaic.version = 11 : i64} {
  func.func @_embed_kernel(%arg0: i32, %arg1: memref<8x5xf32, #tpu.memory_space<vmem>>, %arg2: memref<5x20xf32, #tpu.memory_space<vmem>>, %arg3: memref<20x128xf32, #tpu.memory_space<vmem>>, %arg4: memref<8x128xf32, #tpu.memory_space<vmem>>) attributes {dimension_semantics = [#tpu.dimension_semantics<parallel>], iteration_bounds = array<i64: 1>, scalar_prefetch = 0 : i64, scratch_operands = 0 : i64, tpu.core_type = #tpu.core_type<tc>, window_params = [{transform_indices = @transform_0, window_bounds = array<i64: 8, 5>}, {pipeline_mode = #tpu.pipeline_mode<synchronous>, transform_indices = @transform_1, window_bounds = array<i64: 5, 20>}, {pipeline_mode = #tpu.pipeline_mode<synchronous>, transform_indices = @transform_2, window_bounds = array<i64: 20, 128>}, {transform_indices = @transform_3, window_bounds = array<i64: 8, 128>}]} {
    %c0 = arith.constant 0 : index
    %c0_0 = arith.constant 0 : index
    %0 = vector.load %arg1[%c0, %c0_0] : memref<8x5xf32, #tpu.memory_space<vmem>>, vector<8x5xf32>
    %c0_1 = arith.constant 0 : index
    %c0_2 = arith.constant 0 : index
    %1 = vector.load %arg2[%c0_1, %c0_2] : memref<5x20xf32, #tpu.memory_space<vmem>>, vector<5x20xf32>
    %cst = arith.constant dense<0.000000e+00> : vector<8x20xf32>
    %2 = tpu.matmul %0, %1, %cst {dimension_numbers = #tpu.dot_dimension_numbers<[1], [0], [0], [1], [0, 0, 1, 1], [], []>} : vector<8x5xf32>, vector<5x20xf32>, vector<8x20xf32> -> vector<8x20xf32>
    %cst_3 = arith.constant 0.000000e+00 : f32
    %3 = vector.broadcast %cst_3 : f32 to vector<8x20xf32>
    %4 = arith.cmpf oeq, %2, %3 : vector<8x20xf32>
    %5 = arith.extui %4 : vector<8x20xi1> to vector<8x20xi32>
    %6 = arith.sitofp %5 : vector<8x20xi32> to vector<8x20xf32>
    %c0_4 = arith.constant 0 : index
    %c0_5 = arith.constant 0 : index
    %7 = vector.load %arg3[%c0_4, %c0_5] : memref<20x128xf32, #tpu.memory_space<vmem>>, vector<20x128xf32>
    %cst_6 = arith.constant dense<0.000000e+00> : vector<8x128xf32>
    %8 = tpu.matmul %6, %7, %cst_6 {dimension_numbers = #tpu.dot_dimension_numbers<[1], [0], [0], [1], [0, 0, 1, 1], [], []>} : vector<8x20xf32>, vector<20x128xf32>, vector<8x128xf32> -> vector<8x128xf32>
    %c0_7 = arith.constant 0 : index
    %c0_8 = arith.constant 0 : index
    %9 = vector.load %arg4[%c0_7, %c0_8] : memref<8x128xf32, #tpu.memory_space<vmem>>, vector<8x128xf32>
    tpu.vector_store %arg4[%c0_7, %c0_8], %8 {strides = array<i32>} : memref<8x128xf32, #tpu.memory_space<vmem>>, vector<8x128xf32>,
    return
  }
  func.func @transform_0(%arg0: i32) -> (i32, i32) {
    %c0_i32 = arith.constant 0 : i32
    %c0_i32_0 = arith.constant 0 : i32
    return %arg0, %c0_i32 : i32, i32
  }
  func.func @transform_1(%arg0: i32) -> (i32, i32) {
    %c0_i32 = arith.constant 0 : i32
    %c0_i32_0 = arith.constant 0 : i32
    %c0_i32_1 = arith.constant 0 : i32
    return %c0_i32, %c0_i32_0 : i32, i32
  }
  func.func @transform_2(%arg0: i32) -> (i32, i32) {
    %c0_i32 = arith.constant 0 : i32
    %c0_i32_0 = arith.constant 0 : i32
    %c0_i32_1 = arith.constant 0 : i32
    return %c0_i32, %c0_i32_0 : i32, i32
  }
  func.func @transform_3(%arg0: i32) -> (i32, i32) {
    %c0_i32 = arith.constant 0 : i32
    %c0_i32_0 = arith.constant 0 : i32
    return %arg0, %c0_i32 : i32, i32
  }
}

</mosaic_0001>

<llo_original>
// kernel: tpu_custom_call.1
$region0: #{tpu_custom_call.1}
  #allocation0 [shape = 'u32[]', space=smem, size = 0x4, offset = 0x4, fixed_abs, tag = 'smem constant byte address 0x4 - core index']
  #allocation1 [shape = 'u32[144,128]{1,0:T(1,128)}', space=vmem, size = 0x12000, scoped, tag = 'internal scratch']
  %s0 = inlined_call_operand.hbm [shape: f32[8,5], index: 0, kind: input, shape index: {}]
  %s1 = inlined_call_operand.hbm [shape: f32[5,20], index: 1, kind: input, shape index: {}]
  %s2 = inlined_call_operand.hbm [shape: f32[20,128], index: 2, kind: input, shape index: {}]
  %s3 = inlined_call_operand.hbm [shape: f32[8,128], index: 3, kind: output, shape index: {}]
  %s4 = sld [smem:[#allocation0]]
  $region34: #{tpu_custom_call.1} parent=0
    _
  %s6 = ssub.s32 1, %s4
  %s7 = scalar_select 0, %s6, %s4
  $region1: #{tpu_custom_call.1} parent=0
    #allocation2 [shape = 'u8[4096]{0}', space=vmem, size = 0x1000, scoped, tag = 'input window, operand 0, single buffered']
    #allocation3 [shape = 's32[1]{0}', space=sflag, size = 0x4, scoped, tag = 'scoped memory for tpu_custom_call.1']
    #allocation4 [shape = 's32[1]{0}', space=sflag, size = 0x4, scoped, tag = 'scoped memory for tpu_custom_call.1']
    #allocation5 [shape = 'u8[4096]{0}', space=vmem, size = 0x1000, scoped, tag = 'input window, operand 1, single buffered']
    #allocation6 [shape = 's32[1]{0}', space=sflag, size = 0x4, scoped, tag = 'scoped memory for tpu_custom_call.1']
    #allocation7 [shape = 'u8[12288]{0}', space=vmem, size = 0x3000, scoped, tag = 'input window, operand 2, single buffered']
    #allocation8 [shape = 'u8[4096]{0}', space=vmem, size = 0x1000, scoped, tag = 'output window, operand 0, single buffered']
    %8 = vsyncpa [#allocation3], 0
    %9 = vsyncpa [#allocation6], 0
    %10 = vsyncpa [#allocation4], 0
    // Predicated region
    $region2: #{tpu_custom_call.1} parent=1 // pred_check
      _
    $region3: #{tpu_custom_call.1} parent=1 // pred_check_branch
      %12 = sbr.rel (0) target = $region5
    $region4: #{tpu_custom_call.1} parent=1 // pred_region
      %s14 = ssub.s32 128, 128
      %15 = vsyncadd [#allocation3], %s14
      %s17 = sshll.u32 [#allocation2], 4
      %s18 = int_to_ptr.vmem [resolvable:$true] %s17
      %20 = dma.hbm_to_vmem [thread:$0]  %s0, 128, %s18, [#allocation3]
    $region5: #{tpu_custom_call.1} parent=1 // pred_fallthru
      _
    // Predicated region
    $region6: #{tpu_custom_call.1} parent=1 // pred_check
      _
    $region7: #{tpu_custom_call.1} parent=1 // pred_check_branch
      %22 = sbr.rel (0) target = $region9
    $region8: #{tpu_custom_call.1} parent=1 // pred_region
      %s24 = ssub.s32 128, 128
      %25 = vsyncadd [#allocation6], %s24
      %s27 = sshll.u32 [#allocation5], 4
      %s28 = int_to_ptr.vmem [resolvable:$true] %s27
      %30 = dma.hbm_to_vmem [thread:$0]  %s1, 128, %s28, [#allocation6]
    $region9: #{tpu_custom_call.1} parent=1 // pred_fallthru
      _
    // Predicated region
    $region10: #{tpu_custom_call.1} parent=1 // pred_check
      _
    $region11: #{tpu_custom_call.1} parent=1 // pred_check_branch
      %32 = sbr.rel (0) target = $region13
    $region12: #{tpu_custom_call.1} parent=1 // pred_region
      %s34 = ssub.s32 384, 384
      %35 = vsyncadd [#allocation6], %s34
      %s36 = sshll.u32 [#allocation7], 4
      %s37 = int_to_ptr.vmem [resolvable:$true] %s36
      %42 = dma.hbm_to_vmem [thread:$0]  %s2, 384, %s37, [#allocation6], 128, 128, 8
    $region13: #{tpu_custom_call.1} parent=1 // pred_fallthru
      _
    // Predicated region
    $region14: #{tpu_custom_call.1} parent=1 // pred_check
      _
    $region15: #{tpu_custom_call.1} parent=1 // pred_check_branch
      %44 = sbr.rel (0) target = $region17
    $region16: #{tpu_custom_call.1} parent=1 // pred_region
      %45 = dma.done [#allocation3], 128
    $region17: #{tpu_custom_call.1} parent=1 // pred_fallthru
      _
    // Predicated region
    $region18: #{tpu_custom_call.1} parent=1 // pred_check
      _
    $region19: #{tpu_custom_call.1} parent=1 // pred_check_branch
      %47 = sbr.rel (0) target = $region21
    $region20: #{tpu_custom_call.1} parent=1 // pred_region
      %48 = dma.done [#allocation6], 128
    $region21: #{tpu_custom_call.1} parent=1 // pred_fallthru
      _
    // Predicated region
    $region22: #{tpu_custom_call.1} parent=1 // pred_check
      _
    $region23: #{tpu_custom_call.1} parent=1 // pred_check_branch
      %50 = sbr.rel (0) target = $region25
    $region24: #{tpu_custom_call.1} parent=1 // pred_region
      %51 = dma.done [#allocation6], 384
    $region25: #{tpu_custom_call.1} parent=1 // pred_fallthru
      _
    %v52 = vld [vmem:[#allocation2] sm:$0xff]
    %v53 = vld [vmem:[#allocation5] sm:$0x1f]
    %vm54 = vcmask 39936
    %v56 = vsel %vm54, %v52, 0
    %vm58 = vcmask 1044480
    %v60 = vsel %vm58, %v53, 0
    %62 = vmatprep.subr.mxu0 0.0
    %63 = vmatpush1.msra.mxu0 %v60
    %64 = vmatprep.subr.mxu0 0.0
    %65 = vmatpush1.msra.mxu0 0.0
    %66 = vmatprep.subr.mxu0 0.0
    %67 = vmatpush1.msra.mxu0 0.0
    %68 = vmatprep.subr.mxu0 0.0
    %69 = vmatpush1.msra.mxu0 0.0
    %70 = vmatprep.subr.mxu0 0.0
    %71 = vmatpush1.msra.mxu0 0.0
    %72 = vmatprep.subr.mxu0 0.0
    %73 = vmatpush1.msra.mxu0 0.0
    %74 = vmatprep.subr.mxu0 0.0
    %75 = vmatpush1.msra.mxu0 0.0
    %76 = vmatprep.subr.mxu0 0.0
    %77 = vmatpush1.msra.mxu0 0.0
    %78 = vmatprep.subr.mxu0 0.0
    %79 = vmatpush1.msra.mxu0 0.0
    %80 = vmatprep.subr.mxu0 0.0
    %81 = vmatpush1.msra.mxu0 0.0
    %82 = vmatprep.subr.mxu0 0.0
    %83 = vmatpush1.msra.mxu0 0.0
    %84 = vmatprep.subr.mxu0 0.0
    %85 = vmatpush1.msra.mxu0 0.0
    %86 = vmatprep.subr.mxu0 0.0
    %87 = vmatpush1.msra.mxu0 0.0
    %88 = vmatprep.subr.mxu0 0.0
    %89 = vmatpush1.msra.mxu0 0.0
    %90 = vmatprep.subr.mxu0 0.0
    %91 = vmatpush1.msra.mxu0 0.0
    %92 = vmatprep.subr.mxu0 0.0
    %93 = vmatpush1.msra.mxu0 0.0
    %94 = vmatprep.subr.mxu0 0.0
    %95 = vmatpush1.msra.mxu0 0.0
    %96 = vmatprep.subr.mxu0 0.0
    %97 = vmatpush1.msra.mxu0 0.0
    %98 = vmatprep.subr.mxu0 0.0
    %99 = vmatpush1.msra.mxu0 0.0
    %100 = vmatprep.subr.mxu0 0.0
    %101 = vmatpush1.msra.mxu0 0.0
    %102 = vmatprep.subr.mxu0 0.0
    %103 = vmatpush1.msra.mxu0 0.0
    %104 = vmatprep.subr.mxu0 0.0
    %105 = vmatpush1.msra.mxu0 0.0
    %106 = vmatprep.subr.mxu0 0.0
    %107 = vmatpush1.msra.mxu0 0.0
    %108 = vmatprep.subr.mxu0 0.0
    %109 = vmatpush1.msra.mxu0 0.0
    %110 = vmatprep.subr.mxu0 0.0
    %111 = vmatpush1.msra.mxu0 0.0
    %112 = vmatprep.subr.mxu0 0.0
    %113 = vmatpush1.msra.mxu0 0.0
    %114 = vmatprep.subr.mxu0 0.0
    %115 = vmatpush1.msra.mxu0 0.0
    %116 = vmatprep.subr.mxu0 0.0
    %117 = vmatpush1.msra.mxu0 0.0
    %118 = vmatprep.subr.mxu0 0.0
    %119 = vmatpush1.msra.mxu0 0.0
    %120 = vmatprep.subr.mxu0 0.0
    %121 = vmatpush1.msra.mxu0 0.0
    %122 = vmatprep.subr.mxu0 0.0
    %123 = vmatpush1.msra.mxu0 0.0
    %124 = vmatprep.subr.mxu0 0.0
    %125 = vmatpush1.msra.mxu0 0.0
    %126 = vmatprep.mubr.f32.mxu0 0.0
    %127 = vmatmul.mubr.f32.gmra.mrb[0].mxu0 %v56
    %v128 = vpop.f32.mrb[0].mxu0
    %v129 = vadd.f32 0.0, %v128
    %v130 = vpop.f32.mrb[0].mxu0
    %131 = vdwg.mxu0
    %vm132 = vcmp.eq.f32.partialorder %v129, 0.0
    %v133 = vsel %vm132, 1, 0
    %v134 = vcvt.s32.f32 %v133
    %v135 = vld [vmem:[#allocation7] sm:$0xff]
    %v136 = vld [vmem:[#allocation7 + $0x8] sm:$0xff]
    %v137 = vld [vmem:[#allocation7 + $0x10] sm:$0xf]
    %vm138 = vcmask 162816
    %v140 = vsel %vm138, %v134, 0
    %vm142 = vcmask 1043456
    %v144 = vsel %vm142, %v137, 0
    %146 = vmatprep.subr.mxu0 0.0
    %147 = vmatpush1.msra.mxu0 %v135
    %148 = vmatprep.subr.mxu0 0.0
    %149 = vmatpush1.msra.mxu0 %v136
    %150 = vmatprep.subr.mxu0 0.0
    %151 = vmatpush1.msra.mxu0 %v144
    %152 = vmatprep.subr.mxu0 0.0
    %153 = vmatpush1.msra.mxu0 0.0
    %154 = vmatprep.subr.mxu0 0.0
    %155 = vmatpush1.msra.mxu0 0.0
    %156 = vmatprep.subr.mxu0 0.0
    %157 = vmatpush1.msra.mxu0 0.0
    %158 = vmatprep.subr.mxu0 0.0
    %159 = vmatpush1.msra.mxu0 0.0
    %160 = vmatprep.subr.mxu0 0.0
    %161 = vmatpush1.msra.mxu0 0.0
    %162 = vmatprep.subr.mxu0 0.0
    %163 = vmatpush1.msra.mxu0 0.0
    %164 = vmatprep.subr.mxu0 0.0
    %165 = vmatpush1.msra.mxu0 0.0
    %166 = vmatprep.subr.mxu0 0.0
    %167 = vmatpush1.msra.mxu0 0.0
    %168 = vmatprep.subr.mxu0 0.0
    %169 = vmatpush1.msra.mxu0 0.0
    %170 = vmatprep.subr.mxu0 0.0
    %171 = vmatpush1.msra.mxu0 0.0
    %172 = vmatprep.subr.mxu0 0.0
    %173 = vmatpush1.msra.mxu0 0.0
    %174 = vmatprep.subr.mxu0 0.0
    %175 = vmatpush1.msra.mxu0 0.0
    %176 = vmatprep.subr.mxu0 0.0
    %177 = vmatpush1.msra.mxu0 0.0
    %178 = vmatprep.subr.mxu0 0.0
    %179 = vmatpush1.msra.mxu0 0.0
    %180 = vmatprep.subr.mxu0 0.0
    %181 = vmatpush1.msra.mxu0 0.0
    %182 = vmatprep.subr.mxu0 0.0
    %183 = vmatpush1.msra.mxu0 0.0
    %184 = vmatprep.subr.mxu0 0.0
    %185 = vmatpush1.msra.mxu0 0.0
    %186 = vmatprep.subr.mxu0 0.0
    %187 = vmatpush1.msra.mxu0 0.0
    %188 = vmatprep.subr.mxu0 0.0
    %189 = vmatpush1.msra.mxu0 0.0
    %190 = vmatprep.subr.mxu0 0.0
    %191 = vmatpush1.msra.mxu0 0.0
    %192 = vmatprep.subr.mxu0 0.0
    %193 = vmatpush1.msra.mxu0 0.0
    %194 = vmatprep.subr.mxu0 0.0
    %195 = vmatpush1.msra.mxu0 0.0
    %196 = vmatprep.subr.mxu0 0.0
    %197 = vmatpush1.msra.mxu0 0.0
    %198 = vmatprep.subr.mxu0 0.0
    %199 = vmatpush1.msra.mxu0 0.0
    %200 = vmatprep.subr.mxu0 0.0
    %201 = vmatpush1.msra.mxu0 0.0
    %202 = vmatprep.subr.mxu0 0.0
    %203 = vmatpush1.msra.mxu0 0.0
    %204 = vmatprep.subr.mxu0 0.0
    %205 = vmatpush1.msra.mxu0 0.0
    %206 = vmatprep.subr.mxu0 0.0
    %207 = vmatpush1.msra.mxu0 0.0
    %208 = vmatprep.subr.mxu0 0.0
    %209 = vmatpush1.msra.mxu0 0.0
    %210 = vmatprep.mubr.f32.mxu0 0.0
    %211 = vmatmul.mubr.f32.gmra.mrb[0].mxu0 %v140
    %v212 = vpop.f32.mrb[0].mxu0
    %v213 = vadd.f32 0.0, %v212
    %v214 = vpop.f32.mrb[0].mxu0
    %215 = vdwg.mxu0
    %216 = vst [vmem:[#allocation8] sm:$0xff] %v213
    // Predicated region
    $region26: #{tpu_custom_call.1} parent=1 // pred_check
      _
    $region27: #{tpu_custom_call.1} parent=1 // pred_check_branch
      %218 = sbr.rel (0) target = $region29
    $region28: #{tpu_custom_call.1} parent=1 // pred_region
      %s220 = ssub.s32 128, 128
      %221 = vsyncadd [#allocation4], %s220
      %s223 = sshll.u32 [#allocation8], 4
      %s224 = int_to_ptr.vmem [resolvable:$true] %s223
      %226 = dma.vmem_to_hbm [thread:$0]  %s224, 128, %s3, [#allocation4]
    $region29: #{tpu_custom_call.1} parent=1 // pred_fallthru
      _
    // Predicated region
    $region30: #{tpu_custom_call.1} parent=1 // pred_check
      _
    $region31: #{tpu_custom_call.1} parent=1 // pred_check_branch
      %228 = sbr.rel (0) target = $region33
    $region32: #{tpu_custom_call.1} parent=1 // pred_region
      %229 = dma.done [#allocation4], 128
    $region33: #{tpu_custom_call.1} parent=1 // pred_fallthru
      _
    %230 = vsyncpa [#allocation3], 1
    %231 = vsyncpa [#allocation6], 1
    %232 = vsyncpa [#allocation4], 1

</llo_original>
